<compile_context>
chip_gen: v7x
topology: tpu7x:2x2x1
jax: 0.10.0
libtpu: 0.0.40
codegen_flags: <defaults>
</compile_context>

<pallas_src>
import functools
import math

import numpy as np

import jax
import jax.numpy as jnp
from jax.experimental import pallas as pl
from jax.experimental.pallas import tpu as pltpu


_BLOCK_BYTES = 4 * 1024 * 1024   # padded-VMEM budget per input block
_VMEM_LIMIT = 32 * 1024 * 1024   # safe on v5e/v6e (128 MiB) and v7x (64 MiB)
_MAX_TN = 2048                   # cap on lane width of a kept-axis tile


def _rdown(x, m):
    return (x // m) * m


def _rup(x, m):
    return ((x + m - 1) // m) * m


def _sublanes(dtype) -> int:
    # second-to-last block-dim granularity: 8 (4B), 16 (2B), 32 (1B) dtypes
    return max(8, 32 // np.dtype(dtype).itemsize)


# --------------------------------------------------------------------------
# Kernels
# --------------------------------------------------------------------------

def _sum_mid_acc_kernel(x_ref, o_ref, acc_ref, *, tk, r_total, need_mask):
    """x block (tp, tk, tn); reduce axis 1 (sublanes); lane-dense (tp, tn) out."""
    k = pl.program_id(2)

    @pl.when(k == 0)
    def _init():
        acc_ref[...] = jnp.zeros_like(acc_ref)

    x = x_ref[...]
    if need_mask:  # static: only when the reduce-axis tail block overruns R
        pos = jax.lax.broadcasted_iota(jnp.int32, x.shape, 1) + k * tk
        x = jnp.where(pos < r_total, x, jnp.zeros_like(x))
    acc_ref[...] += jnp.sum(x.astype(acc_ref.dtype), axis=1)

    @pl.when(k == pl.num_programs(2) - 1)
    def _finalize():
        o_ref[...] = acc_ref[...].astype(o_ref.dtype)


def _sum_mid_direct_kernel(x_ref, o_ref, *, acc_dtype):
    """Whole reduce axis in one block: no scratch, no pl.when."""
    o_ref[...] = jnp.sum(x_ref[...].astype(acc_dtype), axis=1).astype(o_ref.dtype)


def _sum_last_acc_kernel(x_ref, o_ref, acc_ref, *, tk, r_total, need_mask):
    """x block (tm, tk); reduce over lanes; (tm, 1) accumulator/output."""
    k = pl.program_id(1)

    @pl.when(k == 0)
    def _init():
        acc_ref[...] = jnp.zeros_like(acc_ref)

    x = x_ref[...]
    if need_mask:
        pos = jax.lax.broadcasted_iota(jnp.int32, x.shape, 1) + k * tk
        x = jnp.where(pos < r_total, x, jnp.zeros_like(x))
    acc_ref[...] += jnp.sum(x.astype(acc_ref.dtype), axis=1, keepdims=True)

    @pl.when(k == pl.num_programs(1) - 1)
    def _finalize():
        o_ref[...] = acc_ref[...].astype(o_ref.dtype)


def _sum_last_direct_kernel(x_ref, o_ref, *, acc_dtype):
    o_ref[...] = jnp.sum(
        x_ref[...].astype(acc_dtype), axis=1, keepdims=True
    ).astype(o_ref.dtype)


# --------------------------------------------------------------------------
# pallas_call builders
# --------------------------------------------------------------------------

def _sum_middle_axis(x3, out_dtype, acc_dtype):
    """x3: (pre, R, post) with post > 1; returns (pre, post)."""
    pre, r, post = x3.shape
    itemsize = np.dtype(x3.dtype).itemsize
    sub_in = _sublanes(x3.dtype)
    sub_out = _sublanes(out_dtype)

    # Lane tile over kept `post` axis (multiple of 128, or full extent if small).
    if post < 128:
        tn = post
    else:
        tn = min(_rdown(post, 128), _MAX_TN)
    lane_bytes = _rup(tn, 128) * itemsize

    # Minimum legal tile over `pre` (second-to-last dim of the OUTPUT block).
    tp_min = pre if pre <= sub_out else sub_out

    budget_rows = max(1, _BLOCK_BYTES // (tp_min * lane_bytes))
    if r <= budget_rows:
        tk = r                       # full reduce axis per block (always legal)
        tk_pad = _rup(tk, sub_in)
        tp_raw = max(1, _BLOCK_BYTES // (tk_pad * lane_bytes))
        if tp_raw >= pre:
            tp = pre
        else:
            tp = max(tp_min, _rdown(tp_raw, sub_out))
    else:
        tp = tp_min
        tk = min(r, max(sub_in, _rdown(budget_rows, sub_in)))

    kt = pl.cdiv(r, tk)
    if kt == 1:
        # Whole reduce axis fits in one block: direct write, no accumulator.
        kernel = functools.partial(_sum_mid_direct_kernel, acc_dtype=acc_dtype)
        return pl.pallas_call(
            kernel,
            out_shape=jax.ShapeDtypeStruct((pre, post), out_dtype),
            grid_spec=pltpu.PrefetchScalarGridSpec(
                num_scalar_prefetch=0,
                grid=(pl.cdiv(pre, tp), pl.cdiv(post, tn)),
                in_specs=[pl.BlockSpec((tp, tk, tn), lambda i, j: (i, 0, j))],
                out_specs=pl.BlockSpec((tp, tn), lambda i, j: (i, j)),
            ),
            compiler_params=pltpu.CompilerParams(
                dimension_semantics=("parallel", "parallel"),
                vmem_limit_bytes=_VMEM_LIMIT,
            ),
        )(x3)

    need_mask = (r % tk != 0)
    kernel = functools.partial(_sum_mid_acc_kernel, tk=tk, r_total=r,
                               need_mask=need_mask)
    return pl.pallas_call(
        kernel,
        out_shape=jax.ShapeDtypeStruct((pre, post), out_dtype),
        grid_spec=pltpu.PrefetchScalarGridSpec(
            num_scalar_prefetch=0,
            grid=(pl.cdiv(pre, tp), pl.cdiv(post, tn), kt),
            in_specs=[pl.BlockSpec((tp, tk, tn), lambda i, j, k: (i, k, j))],
            out_specs=pl.BlockSpec((tp, tn), lambda i, j, k: (i, j)),
            scratch_shapes=[pltpu.VMEM((tp, tn), acc_dtype)],
        ),
        compiler_params=pltpu.CompilerParams(
            dimension_semantics=("parallel", "parallel", "arbitrary"),
            vmem_limit_bytes=_VMEM_LIMIT,
        ),
    )(x3)


def _sum_last_axis(x2, out_dtype, acc_dtype):
    """x2: (rows, R), reduce the last axis; returns (rows, 1)."""
    rows, r = x2.shape
    itemsize = np.dtype(x2.dtype).itemsize
    sub = max(_sublanes(x2.dtype), _sublanes(out_dtype))

    tm_min = rows if rows <= sub else sub
    r_pad = _rup(r, 128)             # VMEM lane padding of the reduce axis
    budget_lanes = max(128, _BLOCK_BYTES // (tm_min * itemsize))
    if r_pad <= budget_lanes:
        tk = r                       # full reduce axis per block
        tm_raw = max(1, _BLOCK_BYTES // (r_pad * itemsize))
        if tm_raw >= rows:
            tm = rows
        else:
            tm = max(tm_min, _rdown(tm_raw, sub))
    else:
        tm = tm_min
        tk = min(r, max(128, _rdown(budget_lanes, 128)))

    kt = pl.cdiv(r, tk)
    if kt == 1:
        kernel = functools.partial(_sum_last_direct_kernel, acc_dtype=acc_dtype)
        return pl.pallas_call(
            kernel,
            out_shape=jax.ShapeDtypeStruct((rows, 1), out_dtype),
            grid_spec=pltpu.PrefetchScalarGridSpec(
                num_scalar_prefetch=0,
                grid=(pl.cdiv(rows, tm),),
                in_specs=[pl.BlockSpec((tm, tk), lambda i: (i, 0))],
                out_specs=pl.BlockSpec((tm, 1), lambda i: (i, 0)),
            ),
            compiler_params=pltpu.CompilerParams(
                dimension_semantics=("parallel",),
                vmem_limit_bytes=_VMEM_LIMIT,
            ),
        )(x2)

    need_mask = (r % tk != 0)
    kernel = functools.partial(_sum_last_acc_kernel, tk=tk, r_total=r,
                               need_mask=need_mask)
    return pl.pallas_call(
        kernel,
        out_shape=jax.ShapeDtypeStruct((rows, 1), out_dtype),
        grid_spec=pltpu.PrefetchScalarGridSpec(
            num_scalar_prefetch=0,
            grid=(pl.cdiv(rows, tm), kt),
            in_specs=[pl.BlockSpec((tm, tk), lambda i, k: (i, k))],
            out_specs=pl.BlockSpec((tm, 1), lambda i, k: (i, 0)),
            scratch_shapes=[pltpu.VMEM((tm, 1), acc_dtype)],
        ),
        compiler_params=pltpu.CompilerParams(
            dimension_semantics=("parallel", "arbitrary"),
            vmem_limit_bytes=_VMEM_LIMIT,
        ),
    )(x2)


# --------------------------------------------------------------------------
# Public wrapper (Sumpool.forward)
# --------------------------------------------------------------------------

@functools.partial(jax.jit, static_argnames=("dim", "keepdim"))
def sumpool(x: jax.Array, dim: int = -1, keepdim: bool = False) -> jax.Array:
    # Match jnp.sum's dtype promotion (ints/bools promote; floats keep dtype).
    out_dtype = jax.eval_shape(lambda: jnp.zeros((), x.dtype).sum()).dtype
    if jnp.issubdtype(out_dtype, jnp.floating) and np.dtype(out_dtype).itemsize < 4:
        acc_dtype = jnp.float32      # f32 accumulation for bf16/f16 inputs
    else:
        acc_dtype = out_dtype        # exact integer accumulation for int/bool

    if x.ndim == 0:
        return x.astype(out_dtype)   # sum over the only "axis" of a 0-d tensor

    ndim = x.ndim
    dim = dim % ndim
    shape = x.shape
    r = shape[dim]
    pre = math.prod(shape[:dim])
    post = math.prod(shape[dim + 1:])
    out_shape = shape[:dim] + shape[dim + 1:]

    if x.dtype == jnp.bool_:
        x = x.astype(out_dtype)      # avoid 1-bit VMEM layouts in the kernel

    if x.size == 0:
        out = jnp.zeros(out_shape, out_dtype)          # empty-axis sums are 0
    elif post > 1:
        out = _sum_middle_axis(x.reshape(pre, r, post), out_dtype, acc_dtype)
        out = out.reshape(out_shape)
    else:
        out = _sum_last_axis(x.reshape(pre, r), out_dtype, acc_dtype)
        out = out[:, 0].reshape(out_shape)

    if keepdim:
        out = jnp.expand_dims(out, dim)
    return out


if __name__ == "__main__":
    key = jax.random.PRNGKey(0)
    x = jax.random.normal(key, (2, 4, 16, 16), dtype=jnp.float32)

    # Default Sumpool(): dim=-1, keepdim=False  (last-axis kernel path)
    y = sumpool(x, dim=-1, keepdim=False)
    jax.block_until_ready(y)
    y_ref = jnp.sum(x, axis=-1)
    assert y.shape == y_ref.shape == (2, 4, 16), y.shape
    assert jnp.allclose(y, y_ref, atol=1e-5, rtol=1e-5)

    # Non-last dim with keepdim=True (middle-axis kernel path)
    y2 = sumpool(x, dim=1, keepdim=True)
    jax.block_until_ready(y2)
    y2_ref = jnp.sum(x, axis=1, keepdims=True)
    assert y2.shape == y2_ref.shape == (2, 1, 16, 16), y2.shape
    assert jnp.allclose(y2, y2_ref, atol=1e-5, rtol=1e-5)

    # dim=0 (pre == 1 corner of the middle-axis path)
    y3 = sumpool(x, dim=0, keepdim=False)
    jax.block_until_ready(y3)
    y3_ref = jnp.sum(x, axis=0)
    assert y3.shape == y3_ref.shape == (4, 16, 16), y3.shape
    assert jnp.allclose(y3, y3_ref, atol=1e-5, rtol=1e-5)

    # Integer input (exact int32 accumulation path)
    xi = jax.random.randint(key, (2, 4, 16, 16), -5, 6, dtype=jnp.int32)
    y4 = sumpool(xi, dim=2, keepdim=False)
    jax.block_until_ready(y4)
    y4_ref = jnp.sum(xi, axis=2)
    assert y4.shape == y4_ref.shape == (2, 4, 16), y4.shape
    assert jnp.array_equal(y4, y4_ref)

    print("KERNEL_OK")
</pallas_src>

<mosaic_0001>
module attributes {stable_mosaic.version = 11 : i64} {
  func.func @_sum_last_direct_kernel(%arg0: i32, %arg1: memref<128x16xf32, #tpu.memory_space<vmem>>, %arg2: memref<128x1xf32, #tpu.memory_space<vmem>>) attributes {dimension_semantics = [#tpu.dimension_semantics<parallel>], iteration_bounds = array<i64: 1>, scalar_prefetch = 0 : i64, scratch_operands = 0 : i64, tpu.core_type = #tpu.core_type<tc>, window_params = [{transform_indices = @transform_0, window_bounds = array<i64: 128, 16>}, {transform_indices = @transform_1, window_bounds = array<i64: 128, 1>}]} {
    %c0 = arith.constant 0 : index
    %c0_0 = arith.constant 0 : index
    %0 = vector.load %arg1[%c0, %c0_0] : memref<128x16xf32, #tpu.memory_space<vmem>>, vector<128x16xf32>
    %cst = arith.constant dense<0.000000e+00> : vector<128xf32>
    %1 = vector.multi_reduction <add>, %0, %cst [1] : vector<128x16xf32> to vector<128xf32>
    %2 = vector.shape_cast %1 : vector<128xf32> to vector<128x1xf32>
    %c0_1 = arith.constant 0 : index
    %c0_2 = arith.constant 0 : index
    %3 = vector.load %arg2[%c0_1, %c0_2] : memref<128x1xf32, #tpu.memory_space<vmem>>, vector<128x1xf32>
    tpu.vector_store %arg2[%c0_1, %c0_2], %2 {strides = array<i32>} : memref<128x1xf32, #tpu.memory_space<vmem>>, vector<128x1xf32>,
    return
  }
  func.func @transform_0(%arg0: i32) -> (i32, i32) {
    %c0_i32 = arith.constant 0 : i32
    %c0_i32_0 = arith.constant 0 : i32
    return %arg0, %c0_i32 : i32, i32
  }
  func.func @transform_1(%arg0: i32) -> (i32, i32) {
    %c0_i32 = arith.constant 0 : i32
    %c0_i32_0 = arith.constant 0 : i32
    return %arg0, %c0_i32 : i32, i32
  }
}

</mosaic_0001>

<llo_original>
// kernel: squeeze.1
$region0: #{squeeze.1}
  %s0 = inlined_call_operand.vmem [shape: f32[128], index: 0, kind: input, shape index: {}]
  %s1 = inlined_call_operand.hbm [shape: f32[2,4,16], index: 1, kind: output, shape index: {}]
  $region1: #{squeeze.1} parent=0
    #allocation0 [shape = 'u8[4096]{0}', space=vmem, size = 0x1000, scoped, tag = 'operand span for operand 1']
    #allocation1 [shape = 's32[1]{0}', space=sflag, size = 0x4, scoped, tag = 'scoped memory for squeeze.1']
    #allocation2 [shape = 'u8[8192]{0}', space=vmem, size = 0x2000, scoped, tag = 'scoped mem for output reshape']
    #allocation3 [shape = 'u8[4096]{0}', space=vmem, size = 0x1000, scoped, tag = 'scoped mem for input reshape']
    %2 = vsyncpa [#allocation1], 0
    %s4 = sshllo.u32 0, 1
    %v5 = vld [vmem:[%s0] sm:%s4]
    %6 = vst [vmem:[#allocation3] sm:%s4] %v5
    %v7 = vld [vmem:[#allocation3] sm:$0x1]
    %vm8 = vcmask 130048
    %9 = vst.msk [vmem:[#allocation2] sm:$0x1] %vm8, %v7
    %v10 = vld [vmem:[#allocation3] sm:$0x1]
    %11 = vrot.lane.b32.xlu0 %v10, 112
    %v12 = vpop.permute.xlu0 %11
    %vm13 = vcmask 130048
    %s14 = scalar_lea.vmem [#allocation2], 1
    %15 = vst.msk [vmem:[%s14] sm:$0x1] %vm13, %v12
    %v16 = vld [vmem:[#allocation3] sm:$0x1]
    %17 = vrot.lane.b32.xlu0 %v16, 96
    %v18 = vpop.permute.xlu0 %17
    %vm19 = vcmask 130048
    %s20 = scalar_lea.vmem [#allocation2], 2
    %21 = vst.msk [vmem:[%s20] sm:$0x1] %vm19, %v18
    %v22 = vld [vmem:[#allocation3] sm:$0x1]
    %23 = vrot.lane.b32.xlu0 %v22, 80
    %v24 = vpop.permute.xlu0 %23
    %vm25 = vcmask 130048
    %s26 = scalar_lea.vmem [#allocation2], 3
    %27 = vst.msk [vmem:[%s26] sm:$0x1] %vm25, %v24
    %v28 = vld [vmem:[#allocation3] sm:$0x1]
    %29 = vrot.lane.b32.xlu0 %v28, 64
    %v30 = vpop.permute.xlu0 %29
    %vm31 = vcmask 130048
    %s32 = scalar_lea.vmem [#allocation2], 8
    %33 = vst.msk [vmem:[%s32] sm:$0x1] %vm31, %v30
    %v34 = vld [vmem:[#allocation3] sm:$0x1]
    %35 = vrot.lane.b32.xlu0 %v34, 48
    %v36 = vpop.permute.xlu0 %35
    %vm37 = vcmask 130048
    %s38 = scalar_lea.vmem [#allocation2], 9
    %39 = vst.msk [vmem:[%s38] sm:$0x1] %vm37, %v36
    %v40 = vld [vmem:[#allocation3] sm:$0x1]
    %41 = vrot.lane.b32.xlu0 %v40, 32
    %v42 = vpop.permute.xlu0 %41
    %vm43 = vcmask 130048
    %s44 = scalar_lea.vmem [#allocation2], 10
    %45 = vst.msk [vmem:[%s44] sm:$0x1] %vm43, %v42
    %v46 = vld [vmem:[#allocation3] sm:$0x1]
    %47 = vrot.lane.b32.xlu0 %v46, 16
    %v48 = vpop.permute.xlu0 %47
    %vm49 = vcmask 130048
    %s50 = scalar_lea.vmem [#allocation2], 11
    %51 = vst.msk [vmem:[%s50] sm:$0x1] %vm49, %v48
    %s53 = sshllo.u32 0, 4
    %v55 = vld [vmem:[#allocation2] sm:%s53]
    %s56 = sshllo.u32 0, 4
    %57 = vst [vmem:[#allocation0] sm:%s56] %v55
    %s58 = scalar_lea.vmem [#allocation2], 8
    %v59 = vld [vmem:[%s58] sm:%s53]
    %s60 = sshllo.u32 0, 4
    %s61 = scalar_lea.vmem [#allocation0], 4
    %62 = vst [vmem:[%s61] sm:%s60] %v59
    %s64 = ssub.s32 128, 128
    %65 = vsyncadd [#allocation1], %s64
    %s67 = sshll.u32 [#allocation0], 4
    %s68 = int_to_ptr.vmem [resolvable:$true] %s67
    %70 = dma.vmem_to_hbm [thread:$0]  %s68, 128, %s1, [#allocation1]
    %71 = dma.done [#allocation1], 128
    %72 = vsyncpa [#allocation1], 1

// kernel: sumpool.1
$region0: #{sumpool.1}
  #allocation0 [shape = 'u32[]', space=smem, size = 0x4, offset = 0x4, fixed_abs, tag = 'smem constant byte address 0x4 - core index']
  #allocation1 [shape = 'u32[144,128]{1,0:T(1,128)}', space=vmem, size = 0x12000, scoped, tag = 'internal scratch']
  %s0 = inlined_call_operand.hbm [shape: f32[128,16], index: 0, kind: input, shape index: {}]
  %s1 = inlined_call_operand.vmem [shape: f32[128,1], index: 1, kind: output, shape index: {}]
  %s2 = sld [smem:[#allocation0]]
  $region18: #{sumpool.1} parent=0
    _
  %s4 = ssub.s32 1, %s2
  %s5 = scalar_select 0, %s4, %s2
  $region1: #{sumpool.1} parent=0
    #allocation2 [shape = 'u8[65536]{0}', space=vmem, size = 0x10000, scoped, tag = 'input window, operand 0, single buffered']
    #allocation3 [shape = 's32[1]{0}', space=sflag, size = 0x4, scoped, tag = 'scoped memory for sumpool.1']
    %6 = vsyncpa [#allocation3], 0
    // Predicated region
    $region2: #{sumpool.1} parent=1 // pred_check
      _
    $region3: #{sumpool.1} parent=1 // pred_check_branch
      %8 = sbr.rel (0) target = $region5
    $region4: #{sumpool.1} parent=1 // pred_region
      %s10 = ssub.s32 2048, 2048
      %11 = vsyncadd [#allocation3], %s10
      %s12 = sshll.u32 [#allocation2], 4
      %s13 = int_to_ptr.vmem [resolvable:$true] %s12
      %18 = dma.hbm_to_vmem [thread:$0]  %s0, 2048, %s13, [#allocation3], 128, 128, 8
    $region5: #{sumpool.1} parent=1 // pred_fallthru
      _
    // Predicated region
    $region6: #{sumpool.1} parent=1 // pred_check
      _
    $region7: #{sumpool.1} parent=1 // pred_check_branch
      %20 = sbr.rel (0) target = $region9
    $region8: #{sumpool.1} parent=1 // pred_region
      %21 = dma.done [#allocation3], 2048
    $region9: #{sumpool.1} parent=1 // pred_fallthru
      _
    %v22 = vld [vmem:[#allocation2] sm:$0xff]
    %v23 = vld [vmem:[#allocation2 + $0x8] sm:$0xff]
    %v24 = vld [vmem:[#allocation2 + $0x10] sm:$0xff]
    %v25 = vld [vmem:[#allocation2 + $0x18] sm:$0xff]
    %v26 = vld [vmem:[#allocation2 + $0x20] sm:$0xff]
    %v27 = vld [vmem:[#allocation2 + $0x28] sm:$0xff]
    %v28 = vld [vmem:[#allocation2 + $0x30] sm:$0xff]
    %v29 = vld [vmem:[#allocation2 + $0x38] sm:$0xff]
    %v30 = vld [vmem:[#allocation2 + $0x40] sm:$0xff]
    %v31 = vld [vmem:[#allocation2 + $0x48] sm:$0xff]
    %v32 = vld [vmem:[#allocation2 + $0x50] sm:$0xff]
    %v33 = vld [vmem:[#allocation2 + $0x58] sm:$0xff]
    %v34 = vld [vmem:[#allocation2 + $0x60] sm:$0xff]
    %v35 = vld [vmem:[#allocation2 + $0x68] sm:$0xff]
    %v36 = vld [vmem:[#allocation2 + $0x70] sm:$0xff]
    %v37 = vld [vmem:[#allocation2 + $0x78] sm:$0xff]
    %vm38 = vcmask 130048
    %v39 = vsel %vm38, %v22, 0.0
    %40 = vadd.xlane.f32.xlu0 %v39
    %v41 = vpop.xlane.xlu0 %40
    %v42 = vsel %vm38, %v23, 0.0
    %43 = vadd.xlane.f32.xlu0 %v42
    %v44 = vpop.xlane.xlu0 %43
    %v45 = vsel %vm38, %v24, 0.0
    %46 = vadd.xlane.f32.xlu0 %v45
    %v47 = vpop.xlane.xlu0 %46
    %v48 = vsel %vm38, %v25, 0.0
    %49 = vadd.xlane.f32.xlu0 %v48
    %v50 = vpop.xlane.xlu0 %49
    %v51 = vsel %vm38, %v26, 0.0
    %52 = vadd.xlane.f32.xlu0 %v51
    %v53 = vpop.xlane.xlu0 %52
    %v54 = vsel %vm38, %v27, 0.0
    %55 = vadd.xlane.f32.xlu0 %v54
    %v56 = vpop.xlane.xlu0 %55
    %v57 = vsel %vm38, %v28, 0.0
    %58 = vadd.xlane.f32.xlu0 %v57
    %v59 = vpop.xlane.xlu0 %58
    %v60 = vsel %vm38, %v29, 0.0
    %61 = vadd.xlane.f32.xlu0 %v60
    %v62 = vpop.xlane.xlu0 %61
    %v63 = vsel %vm38, %v30, 0.0
    %64 = vadd.xlane.f32.xlu0 %v63
    %v65 = vpop.xlane.xlu0 %64
    %v66 = vsel %vm38, %v31, 0.0
    %67 = vadd.xlane.f32.xlu0 %v66
    %v68 = vpop.xlane.xlu0 %67
    %v69 = vsel %vm38, %v32, 0.0
    %70 = vadd.xlane.f32.xlu0 %v69
    %v71 = vpop.xlane.xlu0 %70
    %v72 = vsel %vm38, %v33, 0.0
    %73 = vadd.xlane.f32.xlu0 %v72
    %v74 = vpop.xlane.xlu0 %73
    %v75 = vsel %vm38, %v34, 0.0
    %76 = vadd.xlane.f32.xlu0 %v75
    %v77 = vpop.xlane.xlu0 %76
    %v78 = vsel %vm38, %v35, 0.0
    %79 = vadd.xlane.f32.xlu0 %v78
    %v80 = vpop.xlane.xlu0 %79
    %v81 = vsel %vm38, %v36, 0.0
    %82 = vadd.xlane.f32.xlu0 %v81
    %v83 = vpop.xlane.xlu0 %82
    %v84 = vsel %vm38, %v37, 0.0
    %85 = vadd.xlane.f32.xlu0 %v84
    %v86 = vpop.xlane.xlu0 %85
    %vm87 = vcmask 7168
    %88 = vst.msk [vmem:[%s1] sm:$0xff] %vm87, %v41
    %89 = vst.msk [vmem:[%s1 + $0x8] sm:$0xff] %vm87, %v44
    %90 = vst.msk [vmem:[%s1 + $0x10] sm:$0xff] %vm87, %v47
    %91 = vst.msk [vmem:[%s1 + $0x18] sm:$0xff] %vm87, %v50
    %92 = vst.msk [vmem:[%s1 + $0x20] sm:$0xff] %vm87, %v53
    %93 = vst.msk [vmem:[%s1 + $0x28] sm:$0xff] %vm87, %v56
    %94 = vst.msk [vmem:[%s1 + $0x30] sm:$0xff] %vm87, %v59
    %95 = vst.msk [vmem:[%s1 + $0x38] sm:$0xff] %vm87, %v62
    %96 = vst.msk [vmem:[%s1 + $0x40] sm:$0xff] %vm87, %v65
    %97 = vst.msk [vmem:[%s1 + $0x48] sm:$0xff] %vm87, %v68
    %98 = vst.msk [vmem:[%s1 + $0x50] sm:$0xff] %vm87, %v71
    %99 = vst.msk [vmem:[%s1 + $0x58] sm:$0xff] %vm87, %v74
    %100 = vst.msk [vmem:[%s1 + $0x60] sm:$0xff] %vm87, %v77
    %101 = vst.msk [vmem:[%s1 + $0x68] sm:$0xff] %vm87, %v80
    %102 = vst.msk [vmem:[%s1 + $0x70] sm:$0xff] %vm87, %v83
    %103 = vst.msk [vmem:[%s1 + $0x78] sm:$0xff] %vm87, %v86
    // Predicated region
    $region10: #{sumpool.1} parent=1 // pred_check
      _
    $region11: #{sumpool.1} parent=1 // pred_check_branch
      %105 = sbr.rel (0) target = $region13
    $region12: #{sumpool.1} parent=1 // pred_region
      _
    $region13: #{sumpool.1} parent=1 // pred_fallthru
      _
    // Predicated region
    $region14: #{sumpool.1} parent=1 // pred_check
      _
    $region15: #{sumpool.1} parent=1 // pred_check_branch
      %107 = sbr.rel (0) target = $region17
    $region16: #{sumpool.1} parent=1 // pred_region
      _
    $region17: #{sumpool.1} parent=1 // pred_fallthru
      _
    %108 = vsyncpa [#allocation3], 1

</llo_original>
